<compile_context>
chip_gen: v6e
topology: v6e:2x2x1
jax: 0.10.0
libtpu: 0.0.40
codegen_flags: <defaults>
</compile_context>

<pallas_src>
import jax
import jax.numpy as jnp
from jax.experimental import pallas as pl
from jax.experimental.pallas import tpu as pltpu


def _round_up(x, m):
    return ((x + m - 1) // m) * m


def qfunc_kernel(obs_ref, act_ref, w1_ref, b1_ref, w2_ref, b2_ref,
                 w3r_ref, b3_ref, out_ref):
    # In-VMEM lane concat (no HBM concat, no split layer-1 dot). Concat in f32
    # (native 32-bit lane layout), then cast to bf16 so every dot is a single
    # bf16 MXU pass with f32 accumulation.
    x = jnp.concatenate([obs_ref[...], act_ref[...]], axis=-1)
    x = x.astype(jnp.bfloat16)

    # Layer 1: single GEMM on the concatenated input + ReLU.
    h1 = jnp.dot(x, w1_ref[...], preferred_element_type=jnp.float32)
    h1 = jnp.maximum(h1 + b1_ref[...], 0.0).astype(jnp.bfloat16)

    # Layer 2: GEMM + ReLU.
    h2 = jnp.dot(h1, w2_ref[...], preferred_element_type=jnp.float32)
    h2 = jnp.maximum(h2 + b2_ref[...], 0.0).astype(jnp.bfloat16)

    # Output layer (h2 -> 1), computed as a row so the store is lane-dense:
    #   (1, h2) . (tile_b, h2)^T -> (1, tile_b)
    # If Mosaic lowers this via a transpose of h2, that transpose is bf16 and
    # sits on the idle XLU slot (kernel is MXU-bound); if profiling ever shows
    # vxpose on the critical path, switch to h2 @ w3_col and transpose the
    # narrow (tile_b, 1) column instead.
    q = jax.lax.dot_general(
        w3r_ref[...], h2,
        dimension_numbers=(((1,), (1,)), ((), ())),
        preferred_element_type=jnp.float32)
    out_ref[...] = (q + b3_ref[0]).astype(out_ref.dtype)


def prepare_qfunc_params(params):
    """One-time parameter plumbing, hoisted out of the per-call hot path:
    bf16 weight casts, bias reshapes, w3 as a (1, h2) row, b3 as SMEM scalar."""
    w1, b1, w2, b2, w3, b3 = params
    h1_dim = w1.shape[1]
    h2_dim = w2.shape[1]
    w1b = jnp.asarray(w1, jnp.bfloat16)                      # (obs+act, h1)
    w2b = jnp.asarray(w2, jnp.bfloat16)                      # (h1, h2)
    w3r = jnp.asarray(w3, jnp.float32).reshape(h2_dim, 1).T.astype(jnp.bfloat16)  # (1, h2)
    b1r = jnp.asarray(b1, jnp.float32).reshape(1, h1_dim)
    b2r = jnp.asarray(b2, jnp.float32).reshape(1, h2_dim)
    b3s = jnp.asarray(b3, jnp.float32).reshape(1)            # SMEM scalar
    return (w1b, b1r, w2b, b2r, w3r, b3s)


def mlp_q_function(obs, act, prepared_params, *, tile_b=None):
    """Pallas-backed forward pass of MLPQFunction. Returns shape (B,).

    `prepared_params` must come from prepare_qfunc_params (call it once per
    parameter set and reuse it)."""
    w1b, b1r, w2b, b2r, w3r, b3s = prepared_params
    obs = obs.astype(jnp.float32)
    act = act.astype(jnp.float32)
    B, obs_dim = obs.shape
    act_dim = act.shape[1]
    h1_dim = w1b.shape[1]
    h2_dim = w2b.shape[1]
    assert w1b.shape[0] == obs_dim + act_dim

    b128 = _round_up(B, 128)
    if tile_b is None:
        # Biggest tile that comfortably fits all generations: the (tile_b, 16)
        # and (tile_b, 8) f32 input blocks lane-pad to 128 in VMEM, so at 4096
        # rows the double-buffered inputs + f32/bf16 activations are ~18 MiB,
        # covered by the explicit 32 MiB scoped-VMEM limit below (v5e default
        # is only 16 MiB).
        tile_b = min(4096, b128)
        # v7x megacore: keep >= 2 grid steps when there is enough batch so the
        # "parallel" axis actually shards across the two TensorCores.
        if b128 >= 256:
            tile_b = min(tile_b, _round_up(b128 // 2, 128))
    tile_b = max(128, _round_up(tile_b, 128))

    # No input padding copy: cdiv grid + partial last input block. Only the
    # kernel-allocated OUTPUT is sized to a whole number of tiles.
    num_tiles = pl.cdiv(B, tile_b)
    out_w = num_tiles * tile_b

    const2 = lambda i: (0, 0)            # resident blocks (same tile every step)
    q_row = pl.pallas_call(
        qfunc_kernel,
        grid=(num_tiles,),
        out_shape=jax.ShapeDtypeStruct((1, out_w), jnp.float32),
        in_specs=[
            pl.BlockSpec((tile_b, obs_dim), lambda i: (i, 0)),        # obs tile
            pl.BlockSpec((tile_b, act_dim), lambda i: (i, 0)),        # act tile
            pl.BlockSpec((obs_dim + act_dim, h1_dim), const2),        # W1 (bf16, resident)
            pl.BlockSpec((1, h1_dim), const2),                        # b1
            pl.BlockSpec((h1_dim, h2_dim), const2),                   # W2 (bf16)
            pl.BlockSpec((1, h2_dim), const2),                        # b2
            pl.BlockSpec((1, h2_dim), const2),                        # W3 row (bf16)
            pl.BlockSpec(memory_space=pltpu.MemorySpace.SMEM),        # b3 scalar
        ],
        out_specs=pl.BlockSpec((1, tile_b), lambda i: (0, i)),        # lane-dense row
        compiler_params=pltpu.CompilerParams(
            dimension_semantics=("parallel",),      # megacore sharding on v7x
            vmem_limit_bytes=32 * 1024 * 1024),
    )(obs, act, w1b, b1r, w2b, b2r, w3r, b3s)

    # Columns >= B hold garbage computed from the partial last input block
    # (there is no zero padding anymore). NEVER consume q_row without this
    # slice (no reductions over the raw row).
    return q_row.reshape(out_w)[:B]


def init_params(key, obs_dim, act_dim, hidden_sizes):
    """Deterministic init mimicking nn.Linear's U(-1/sqrt(fan_in), 1/sqrt(fan_in))."""
    sizes = [obs_dim + act_dim] + list(hidden_sizes) + [1]
    params = []
    for j in range(len(sizes) - 1):
        fan_in, fan_out = sizes[j], sizes[j + 1]
        key, kw, kb = jax.random.split(key, 3)
        bound = 1.0 / jnp.sqrt(fan_in)
        # stored as (in, out) so the kernel does x @ W
        w = jax.random.uniform(kw, (fan_in, fan_out), jnp.float32, -bound, bound)
        b = jax.random.uniform(kb, (1, fan_out), jnp.float32, -bound, bound)
        params += [w, b]
    return tuple(params)


def reference_forward(obs, act, params, *, bf16_operands=True):
    """Pure-JAX reference. bf16_operands=True mirrors the kernel's numerics
    (bf16 MXU operands, f32 accumulation); False is the pure-f32 reference."""
    w1, b1, w2, b2, w3, b3 = params
    cast = (lambda a: a.astype(jnp.bfloat16)) if bf16_operands else (lambda a: a)
    x = jnp.concatenate([obs, act], axis=-1)
    h = jnp.maximum(
        jnp.dot(cast(x), cast(w1), preferred_element_type=jnp.float32) + b1, 0.0)
    h = jnp.maximum(
        jnp.dot(cast(h), cast(w2), preferred_element_type=jnp.float32) + b2, 0.0)
    q = jnp.dot(cast(h), cast(w3), preferred_element_type=jnp.float32) + b3
    return jnp.squeeze(q, -1)


if __name__ == "__main__":
    # Small shapes consistent with the module's forward.
    batch, obs_dim, act_dim = 8, 16, 8
    hidden_sizes = (32, 32)

    key = jax.random.PRNGKey(0)
    k_obs, k_act, k_par, k_obs2, k_act2 = jax.random.split(key, 5)
    obs = jax.random.normal(k_obs, (batch, obs_dim), jnp.float32)
    act = jax.random.normal(k_act, (batch, act_dim), jnp.float32)
    params = init_params(k_par, obs_dim, act_dim, hidden_sizes)
    prepared = prepare_qfunc_params(params)   # hoisted, done once per param set

    q = mlp_q_function(obs, act, prepared)
    jax.block_until_ready(q)
    assert q.shape == (batch,), q.shape
    # Tight check vs a bf16-matched reference, loose check vs pure f32.
    q_ref_bf16 = reference_forward(obs, act, params, bf16_operands=True)
    q_ref_f32 = reference_forward(obs, act, params, bf16_operands=False)
    assert jnp.allclose(q, q_ref_bf16, atol=1e-2, rtol=1e-2), (q, q_ref_bf16)
    assert jnp.allclose(q, q_ref_f32, atol=5e-2, rtol=5e-2), (q, q_ref_f32)

    # Multi-tile path: grid > 1 and a ragged batch (exercises the partial last
    # input block — no input padding copy is made).
    batch2 = 300
    obs2 = jax.random.normal(k_obs2, (batch2, obs_dim), jnp.float32)
    act2 = jax.random.normal(k_act2, (batch2, act_dim), jnp.float32)
    q2 = mlp_q_function(obs2, act2, prepared, tile_b=128)
    jax.block_until_ready(q2)
    assert q2.shape == (batch2,), q2.shape
    q2_ref = reference_forward(obs2, act2, params, bf16_operands=True)
    assert jnp.allclose(q2, q2_ref, atol=1e-2, rtol=1e-2), (q2, q2_ref)

    print("KERNEL_OK")
</pallas_src>

<mosaic_0001>
module attributes {stable_mosaic.version = 11 : i64} {
  func.func @qfunc_kernel(%arg0: i32, %arg1: memref<128x16xf32, #tpu.memory_space<vmem>>, %arg2: memref<128x8xf32, #tpu.memory_space<vmem>>, %arg3: memref<24x32xbf16, #tpu.memory_space<vmem>>, %arg4: memref<1x32xf32, #tpu.memory_space<vmem>>, %arg5: memref<32x32xbf16, #tpu.memory_space<vmem>>, %arg6: memref<1x32xf32, #tpu.memory_space<vmem>>, %arg7: memref<1x32xbf16, #tpu.memory_space<vmem>>, %arg8: memref<1xf32, #tpu.memory_space<smem>>, %arg9: memref<1x128xf32, #tpu.memory_space<vmem>>) attributes {dimension_semantics = [#tpu.dimension_semantics<parallel>], iteration_bounds = array<i64: 1>, scalar_prefetch = 0 : i64, scratch_operands = 0 : i64, tpu.core_type = #tpu.core_type<tc>, window_params = [{transform_indices = @transform_0, window_bounds = array<i64: 128, 16>}, {transform_indices = @transform_1, window_bounds = array<i64: 128, 8>}, {pipeline_mode = #tpu.pipeline_mode<synchronous>, transform_indices = @transform_2, window_bounds = array<i64: 24, 32>}, {pipeline_mode = #tpu.pipeline_mode<synchronous>, transform_indices = @transform_3, window_bounds = array<i64: 1, 32>}, {pipeline_mode = #tpu.pipeline_mode<synchronous>, transform_indices = @transform_4, window_bounds = array<i64: 32, 32>}, {pipeline_mode = #tpu.pipeline_mode<synchronous>, transform_indices = @transform_5, window_bounds = array<i64: 1, 32>}, {pipeline_mode = #tpu.pipeline_mode<synchronous>, transform_indices = @transform_6, window_bounds = array<i64: 1, 32>}, {transform_indices = @transform_7, window_bounds = array<i64: 1>}, {transform_indices = @transform_8, window_bounds = array<i64: 1, 128>}]} {
    %c0 = arith.constant 0 : index
    %c0_0 = arith.constant 0 : index
    %0 = vector.load %arg1[%c0, %c0_0] : memref<128x16xf32, #tpu.memory_space<vmem>>, vector<128x16xf32>
    %c0_1 = arith.constant 0 : index
    %c0_2 = arith.constant 0 : index
    %1 = vector.load %arg2[%c0_1, %c0_2] : memref<128x8xf32, #tpu.memory_space<vmem>>, vector<128x8xf32>
    %2 = tpu.concatenate %0, %1 in 1 : vector<128x16xf32>, vector<128x8xf32> -> vector<128x24xf32>
    %3 = arith.truncf %2 : vector<128x24xf32> to vector<128x24xbf16>
    %c0_3 = arith.constant 0 : index
    %c0_4 = arith.constant 0 : index
    %4 = vector.load %arg3[%c0_3, %c0_4] : memref<24x32xbf16, #tpu.memory_space<vmem>>, vector<24x32xbf16>
    %cst = arith.constant dense<0.000000e+00> : vector<128x32xf32>
    %5 = tpu.matmul %3, %4, %cst {dimension_numbers = #tpu.dot_dimension_numbers<[1], [0], [0], [1], [0, 0, 1, 1], [], []>} : vector<128x24xbf16>, vector<24x32xbf16>, vector<128x32xf32> -> vector<128x32xf32>
    %c0_5 = arith.constant 0 : index
    %c0_6 = arith.constant 0 : index
    %6 = vector.load %arg4[%c0_5, %c0_6] : memref<1x32xf32, #tpu.memory_space<vmem>>, vector<1x32xf32>
    %7 = vector.broadcast %6 : vector<1x32xf32> to vector<128x32xf32>
    %8 = arith.addf %5, %7 : vector<128x32xf32>
    %cst_7 = arith.constant 0.000000e+00 : f32
    %9 = vector.broadcast %cst_7 : f32 to vector<128x32xf32>
    %10 = arith.maximumf %8, %9 : vector<128x32xf32>
    %11 = arith.truncf %10 : vector<128x32xf32> to vector<128x32xbf16>
    %c0_8 = arith.constant 0 : index
    %c0_9 = arith.constant 0 : index
    %12 = vector.load %arg5[%c0_8, %c0_9] : memref<32x32xbf16, #tpu.memory_space<vmem>>, vector<32x32xbf16>
    %cst_10 = arith.constant dense<0.000000e+00> : vector<128x32xf32>
    %13 = tpu.matmul %11, %12, %cst_10 {dimension_numbers = #tpu.dot_dimension_numbers<[1], [0], [0], [1], [0, 0, 1, 1], [], []>} : vector<128x32xbf16>, vector<32x32xbf16>, vector<128x32xf32> -> vector<128x32xf32>
    %c0_11 = arith.constant 0 : index
    %c0_12 = arith.constant 0 : index
    %14 = vector.load %arg6[%c0_11, %c0_12] : memref<1x32xf32, #tpu.memory_space<vmem>>, vector<1x32xf32>
    %15 = vector.broadcast %14 : vector<1x32xf32> to vector<128x32xf32>
    %16 = arith.addf %13, %15 : vector<128x32xf32>
    %cst_13 = arith.constant 0.000000e+00 : f32
    %17 = vector.broadcast %cst_13 : f32 to vector<128x32xf32>
    %18 = arith.maximumf %16, %17 : vector<128x32xf32>
    %19 = arith.truncf %18 : vector<128x32xf32> to vector<128x32xbf16>
    %c0_14 = arith.constant 0 : index
    %c0_15 = arith.constant 0 : index
    %20 = vector.load %arg7[%c0_14, %c0_15] : memref<1x32xbf16, #tpu.memory_space<vmem>>, vector<1x32xbf16>
    %cst_16 = arith.constant dense<0.000000e+00> : vector<1x128xf32>
    %21 = tpu.matmul %20, %19, %cst_16 {dimension_numbers = #tpu.dot_dimension_numbers<[1], [1], [0], [0], [0, 0, 1, 0], [], []>} : vector<1x32xbf16>, vector<128x32xbf16>, vector<1x128xf32> -> vector<1x128xf32>
    %c0_17 = arith.constant 0 : index
    %22 = memref.load %arg8[%c0_17] : memref<1xf32, #tpu.memory_space<smem>>
    %23 = vector.broadcast %22 : f32 to vector<1x128xf32>
    %24 = arith.addf %21, %23 : vector<1x128xf32>
    %c0_18 = arith.constant 0 : index
    %c0_19 = arith.constant 0 : index
    %25 = vector.load %arg9[%c0_18, %c0_19] : memref<1x128xf32, #tpu.memory_space<vmem>>, vector<1x128xf32>
    tpu.vector_store %arg9[%c0_18, %c0_19], %24 {strides = array<i32>} : memref<1x128xf32, #tpu.memory_space<vmem>>, vector<1x128xf32>,
    return
  }
  func.func @transform_0(%arg0: i32) -> (i32, i32) {
    %c0_i32 = arith.constant 0 : i32
    %c0_i32_0 = arith.constant 0 : i32
    return %arg0, %c0_i32 : i32, i32
  }
  func.func @transform_1(%arg0: i32) -> (i32, i32) {
    %c0_i32 = arith.constant 0 : i32
    %c0_i32_0 = arith.constant 0 : i32
    return %arg0, %c0_i32 : i32, i32
  }
  func.func @transform_2(%arg0: i32) -> (i32, i32) {
    %c0_i32 = arith.constant 0 : i32
    %c0_i32_0 = arith.constant 0 : i32
    %c0_i32_1 = arith.constant 0 : i32
    return %c0_i32, %c0_i32_0 : i32, i32
  }
  func.func @transform_3(%arg0: i32) -> (i32, i32) {
    %c0_i32 = arith.constant 0 : i32
    %c0_i32_0 = arith.constant 0 : i32
    %c0_i32_1 = arith.constant 0 : i32
    return %c0_i32, %c0_i32_0 : i32, i32
  }
  func.func @transform_4(%arg0: i32) -> (i32, i32) {
    %c0_i32 = arith.constant 0 : i32
    %c0_i32_0 = arith.constant 0 : i32
    %c0_i32_1 = arith.constant 0 : i32
    return %c0_i32, %c0_i32_0 : i32, i32
  }
  func.func @transform_5(%arg0: i32) -> (i32, i32) {
    %c0_i32 = arith.constant 0 : i32
    %c0_i32_0 = arith.constant 0 : i32
    %c0_i32_1 = arith.constant 0 : i32
    return %c0_i32, %c0_i32_0 : i32, i32
  }
  func.func @transform_6(%arg0: i32) -> (i32, i32) {
    %c0_i32 = arith.constant 0 : i32
    %c0_i32_0 = arith.constant 0 : i32
    %c0_i32_1 = arith.constant 0 : i32
    return %c0_i32, %c0_i32_0 : i32, i32
  }
  func.func @transform_7(%arg0: i32) -> i32 {
    %c0_i32 = arith.constant 0 : i32
    %c0_i32_0 = arith.constant 0 : i32
    return %c0_i32 : i32
  }
  func.func @transform_8(%arg0: i32) -> (i32, i32) {
    %c0_i32 = arith.constant 0 : i32
    %c0_i32_0 = arith.constant 0 : i32
    return %c0_i32, %arg0 : i32, i32
  }
}

</mosaic_0001>

<llo_original>
// kernel: tpu_custom_call.1
$region0: #{tpu_custom_call.1}
  #allocation0 [shape = 'u32[]', space=smem, size = 0x4, offset = 0x4, fixed_abs, tag = 'smem constant byte address 0x4 - core index']
  #allocation1 [shape = 'u32[144,128]{1,0:T(1,128)}', space=vmem, size = 0x12000, scoped, tag = 'internal scratch']
  #allocation2 [shape = 'f32[1]{0:T(128)S(6)}', space=smem, size = 0x200, scoped, tag = 'scoped memory for tpu_custom_call.1']
  %s0 = inlined_call_operand.hbm [shape: f32[8,16], index: 0, kind: input, shape index: {}]
  %s1 = inlined_call_operand.hbm [shape: f32[8,8], index: 1, kind: input, shape index: {}]
  %s2 = inlined_call_operand.hbm [shape: bf16[24,32], index: 2, kind: input, shape index: {}]
  %s3 = inlined_call_operand.vmem [shape: f32[1,32], index: 3, kind: input, shape index: {}]
  %s4 = inlined_call_operand.hbm [shape: bf16[32,32], index: 4, kind: input, shape index: {}]
  %s5 = inlined_call_operand.vmem [shape: f32[1,32], index: 5, kind: input, shape index: {}]
  %s6 = inlined_call_operand.vmem [shape: bf16[1,32], index: 6, kind: input, shape index: {}]
  %s7 = inlined_call_operand.<no memory space> [shape: f32[1], index: 7, kind: input, shape index: {}]
  %s8 = inlined_call_operand.hbm [shape: f32[1,128], index: 8, kind: output, shape index: {}]
  %s9 = sld [smem:[#allocation0]]
  $region58: #{tpu_custom_call.1} parent=0
    _
  %s11 = ssub.s32 1, %s9
  %s12 = scalar_select 0, %s11, %s9
  %13 = sst [smem:[#allocation2]] %s7
  $region1: #{tpu_custom_call.1} parent=0
    #allocation3 [shape = 'u8[65536]{0}', space=vmem, size = 0x10000, scoped, tag = 'input window, operand 0, single buffered']
    #allocation4 [shape = 's32[1]{0}', space=sflag, size = 0x4, scoped, tag = 'scoped memory for tpu_custom_call.1']
    #allocation5 [shape = 's32[1]{0}', space=sflag, size = 0x4, scoped, tag = 'scoped memory for tpu_custom_call.1']
    #allocation6 [shape = 'u8[65536]{0}', space=vmem, size = 0x10000, scoped, tag = 'input window, operand 1, single buffered']
    #allocation7 [shape = 's32[1]{0}', space=sflag, size = 0x4, scoped, tag = 'scoped memory for tpu_custom_call.1']
    #allocation8 [shape = 'u8[6144]{0}', space=vmem, size = 0x1800, scoped, tag = 'input window, operand 2, single buffered']
    #allocation9 [shape = 'u8[8192]{0}', space=vmem, size = 0x2000, scoped, tag = 'input window, operand 4, single buffered']
    #allocation10 [shape = 's32[1]{0}', space=sflag, size = 0x4, scoped, tag = 'scoped memory for tpu_custom_call.1']
    #allocation11 [shape = 'u8[512]{0}', space=vmem, size = 0x400, scoped, tag = 'output window, operand 0, single buffered']
    %14 = vsyncpa [#allocation4], 0
    %15 = vsyncpa [#allocation7], 0
    %16 = vsyncpa [#allocation10], 0
    %17 = vsyncpa [#allocation5], 0
    // Predicated region
    $region2: #{tpu_custom_call.1} parent=1 // pred_check
      _
    $region3: #{tpu_custom_call.1} parent=1 // pred_check_branch
      %19 = sbr.rel (0) target = $region5
    $region4: #{tpu_custom_call.1} parent=1 // pred_region
      %s21 = ssub.s32 2048, 128
      %22 = vsyncadd [#allocation4], %s21
      %s23 = sshll.u32 [#allocation3], 4
      %s24 = int_to_ptr.vmem [resolvable:$true] %s23
      %29 = dma.hbm_to_vmem [thread:$0]  %s0, 128, %s24, [#allocation4], 128, 128, 8
    $region5: #{tpu_custom_call.1} parent=1 // pred_fallthru
      _
    // Predicated region
    $region6: #{tpu_custom_call.1} parent=1 // pred_check
      _
    $region7: #{tpu_custom_call.1} parent=1 // pred_check_branch
      %31 = sbr.rel (0) target = $region9
    $region8: #{tpu_custom_call.1} parent=1 // pred_region
      %s33 = ssub.s32 2048, 128
      %34 = vsyncadd [#allocation7], %s33
      %s35 = sshll.u32 [#allocation6], 4
      %s36 = int_to_ptr.vmem [resolvable:$true] %s35
      %41 = dma.hbm_to_vmem [thread:$0]  %s1, 128, %s36, [#allocation7], 128, 128, 8
    $region9: #{tpu_custom_call.1} parent=1 // pred_fallthru
      _
    // Predicated region
    $region10: #{tpu_custom_call.1} parent=1 // pred_check
      _
    $region11: #{tpu_custom_call.1} parent=1 // pred_check_branch
      %43 = sbr.rel (0) target = $region13
    $region12: #{tpu_custom_call.1} parent=1 // pred_region
      %s45 = ssub.s32 192, 192
      %46 = vsyncadd [#allocation7], %s45
      %s47 = sshll.u32 [#allocation8], 4
      %s48 = int_to_ptr.vmem [resolvable:$true] %s47
      %53 = dma.hbm_to_vmem [thread:$0]  %s2, 192, %s48, [#allocation7], 64, 64, 4
    $region13: #{tpu_custom_call.1} parent=1 // pred_fallthru
      _
    // Predicated region
    $region14: #{tpu_custom_call.1} parent=1 // pred_check
      _
    $region15: #{tpu_custom_call.1} parent=1 // pred_check_branch
      %55 = sbr.rel (0) target = $region17
    $region16: #{tpu_custom_call.1} parent=1 // pred_region
      _
    $region17: #{tpu_custom_call.1} parent=1 // pred_fallthru
      _
    // Predicated region
    $region18: #{tpu_custom_call.1} parent=1 // pred_check
      _
    $region19: #{tpu_custom_call.1} parent=1 // pred_check_branch
      %57 = sbr.rel (0) target = $region21
    $region20: #{tpu_custom_call.1} parent=1 // pred_region
      %s59 = ssub.s32 256, 256
      %60 = vsyncadd [#allocation10], %s59
      %s61 = sshll.u32 [#allocation9], 4
      %s62 = int_to_ptr.vmem [resolvable:$true] %s61
      %67 = dma.hbm_to_vmem [thread:$0]  %s4, 256, %s62, [#allocation10], 64, 64, 4
    $region21: #{tpu_custom_call.1} parent=1 // pred_fallthru
      _
    // Predicated region
    $region22: #{tpu_custom_call.1} parent=1 // pred_check
      _
    $region23: #{tpu_custom_call.1} parent=1 // pred_check_branch
      %69 = sbr.rel (0) target = $region25
    $region24: #{tpu_custom_call.1} parent=1 // pred_region
      _
    $region25: #{tpu_custom_call.1} parent=1 // pred_fallthru
      _
    // Predicated region
    $region26: #{tpu_custom_call.1} parent=1 // pred_check
      _
    $region27: #{tpu_custom_call.1} parent=1 // pred_check_branch
      %71 = sbr.rel (0) target = $region29
    $region28: #{tpu_custom_call.1} parent=1 // pred_region
      _
    $region29: #{tpu_custom_call.1} parent=1 // pred_fallthru
      _
    // Predicated region
    $region30: #{tpu_custom_call.1} parent=1 // pred_check
      _
    $region31: #{tpu_custom_call.1} parent=1 // pred_check_branch
      %73 = sbr.rel (0) target = $region33
    $region32: #{tpu_custom_call.1} parent=1 // pred_region
      _
    $region33: #{tpu_custom_call.1} parent=1 // pred_fallthru
      _
    // Predicated region
    $region34: #{tpu_custom_call.1} parent=1 // pred_check
      _
    $region35: #{tpu_custom_call.1} parent=1 // pred_check_branch
      %75 = sbr.rel (0) target = $region37
    $region36: #{tpu_custom_call.1} parent=1 // pred_region
      %76 = dma.done [#allocation4], 2048
    $region37: #{tpu_custom_call.1} parent=1 // pred_fallthru
      _
    // Predicated region
    $region38: #{tpu_custom_call.1} parent=1 // pred_check
      _
    $region39: #{tpu_custom_call.1} parent=1 // pred_check_branch
      %78 = sbr.rel (0) target = $region41
    $region40: #{tpu_custom_call.1} parent=1 // pred_region
      %79 = dma.done [#allocation7], 2048
    $region41: #{tpu_custom_call.1} parent=1 // pred_fallthru
      _
    // Predicated region
    $region42: #{tpu_custom_call.1} parent=1 // pred_check
      _
    $region43: #{tpu_custom_call.1} parent=1 // pred_check_branch
      %81 = sbr.rel (0) target = $region45
    $region44: #{tpu_custom_call.1} parent=1 // pred_region
      %82 = dma.done [#allocation7], 192
    $region45: #{tpu_custom_call.1} parent=1 // pred_fallthru
      _
    // Predicated region
    $region46: #{tpu_custom_call.1} parent=1 // pred_check
      _
    $region47: #{tpu_custom_call.1} parent=1 // pred_check_branch
      %84 = sbr.rel (0) target = $region49
    $region48: #{tpu_custom_call.1} parent=1 // pred_region
      %85 = dma.done [#allocation10], 256
    $region49: #{tpu_custom_call.1} parent=1 // pred_fallthru
      _
    %v87 = vld [vmem:[#allocation3] sm:$0xff]
    %v88 = vld [vmem:[#allocation3 + $0x8] sm:$0xff]
    %v89 = vld [vmem:[#allocation3 + $0x10] sm:$0xff]
    %v90 = vld [vmem:[#allocation3 + $0x18] sm:$0xff]
    %v91 = vld [vmem:[#allocation3 + $0x20] sm:$0xff]
    %v92 = vld [vmem:[#allocation3 + $0x28] sm:$0xff]
    %v93 = vld [vmem:[#allocation3 + $0x30] sm:$0xff]
    %v94 = vld [vmem:[#allocation3 + $0x38] sm:$0xff]
    %v95 = vld [vmem:[#allocation3 + $0x40] sm:$0xff]
    %v96 = vld [vmem:[#allocation3 + $0x48] sm:$0xff]
    %v97 = vld [vmem:[#allocation3 + $0x50] sm:$0xff]
    %v98 = vld [vmem:[#allocation3 + $0x58] sm:$0xff]
    %v99 = vld [vmem:[#allocation3 + $0x60] sm:$0xff]
    %v100 = vld [vmem:[#allocation3 + $0x68] sm:$0xff]
    %v101 = vld [vmem:[#allocation3 + $0x70] sm:$0xff]
    %v102 = vld [vmem:[#allocation3 + $0x78] sm:$0xff]
    %v103 = vld [vmem:[#allocation6] sm:$0xff]
    %v104 = vld [vmem:[#allocation6 + $0x8] sm:$0xff]
    %v105 = vld [vmem:[#allocation6 + $0x10] sm:$0xff]
    %v106 = vld [vmem:[#allocation6 + $0x18] sm:$0xff]
    %v107 = vld [vmem:[#allocation6 + $0x20] sm:$0xff]
    %v108 = vld [vmem:[#allocation6 + $0x28] sm:$0xff]
    %v109 = vld [vmem:[#allocation6 + $0x30] sm:$0xff]
    %v110 = vld [vmem:[#allocation6 + $0x38] sm:$0xff]
    %v111 = vld [vmem:[#allocation6 + $0x40] sm:$0xff]
    %v112 = vld [vmem:[#allocation6 + $0x48] sm:$0xff]
    %v113 = vld [vmem:[#allocation6 + $0x50] sm:$0xff]
    %v114 = vld [vmem:[#allocation6 + $0x58] sm:$0xff]
    %v115 = vld [vmem:[#allocation6 + $0x60] sm:$0xff]
    %v116 = vld [vmem:[#allocation6 + $0x68] sm:$0xff]
    %v117 = vld [vmem:[#allocation6 + $0x70] sm:$0xff]
    %v118 = vld [vmem:[#allocation6 + $0x78] sm:$0xff]
    %135 = vrot.lane.b32.xlu0 %v103, 16
    %v136 = vpop.permute.xlu0 %135
    %137 = vrot.lane.b32.xlu0 %v104, 16
    %v138 = vpop.permute.xlu0 %137
    %139 = vrot.lane.b32.xlu0 %v105, 16
    %v140 = vpop.permute.xlu0 %139
    %141 = vrot.lane.b32.xlu0 %v106, 16
    %v142 = vpop.permute.xlu0 %141
    %143 = vrot.lane.b32.xlu0 %v107, 16
    %v144 = vpop.permute.xlu0 %143
    %145 = vrot.lane.b32.xlu0 %v108, 16
    %v146 = vpop.permute.xlu0 %145
    %147 = vrot.lane.b32.xlu0 %v109, 16
    %v148 = vpop.permute.xlu0 %147
    %149 = vrot.lane.b32.xlu0 %v110, 16
    %v150 = vpop.permute.xlu0 %149
    %151 = vrot.lane.b32.xlu0 %v111, 16
    %v152 = vpop.permute.xlu0 %151
    %153 = vrot.lane.b32.xlu0 %v112, 16
    %v154 = vpop.permute.xlu0 %153
    %155 = vrot.lane.b32.xlu0 %v113, 16
    %v156 = vpop.permute.xlu0 %155
    %157 = vrot.lane.b32.xlu0 %v114, 16
    %v158 = vpop.permute.xlu0 %157
    %159 = vrot.lane.b32.xlu0 %v115, 16
    %v160 = vpop.permute.xlu0 %159
    %161 = vrot.lane.b32.xlu0 %v116, 16
    %v162 = vpop.permute.xlu0 %161
    %163 = vrot.lane.b32.xlu0 %v117, 16
    %v164 = vpop.permute.xlu0 %163
    %165 = vrot.lane.b32.xlu0 %v118, 16
    %v166 = vpop.permute.xlu0 %165
    %vm183 = vcmask 130048
    %v184 = vsel %vm183, %v87, %v136
    %v185 = vsel %vm183, %v88, %v138
    %v186 = vsel %vm183, %v89, %v140
    %v187 = vsel %vm183, %v90, %v142
    %v188 = vsel %vm183, %v91, %v144
    %v189 = vsel %vm183, %v92, %v146
    %v190 = vsel %vm183, %v93, %v148
    %v191 = vsel %vm183, %v94, %v150
    %v192 = vsel %vm183, %v95, %v152
    %v193 = vsel %vm183, %v96, %v154
    %v194 = vsel %vm183, %v97, %v156
    %v195 = vsel %vm183, %v98, %v158
    %v196 = vsel %vm183, %v99, %v160
    %v197 = vsel %vm183, %v100, %v162
    %v198 = vsel %vm183, %v101, %v164
    %v199 = vsel %vm183, %v102, %v166
    %v200 = vpack.c.bf16 %v185, %v184
    %v201 = vpack.c.bf16 %v187, %v186
    %v202 = vpack.c.bf16 %v189, %v188
    %v203 = vpack.c.bf16 %v191, %v190
    %v204 = vpack.c.bf16 %v193, %v192
    %v205 = vpack.c.bf16 %v195, %v194
    %v206 = vpack.c.bf16 %v197, %v196
    %v207 = vpack.c.bf16 %v199, %v198
    %v208 = vld [vmem:[#allocation8] sm:$0xf]
    %v209 = vld [vmem:[#allocation8 + $0x4] sm:$0xf]
    %v210 = vld [vmem:[#allocation8 + $0x8] sm:$0xf]
    %v211 = vld [vmem:[%s3] sm:$0x1]
    %v213 = vlaneseq
    %v214 = vshrl.u32 %v213, 7
    %v215 = vsub.s32 0, %v214
    %v216 = vrot.slane %v211, %v215
    %v221 = vunpack.c.l.b16 %v208
    %v222 = vunpack.c.l.b16 %v209
    %v223 = vunpack.c.l.b16 %v210
    %v224 = vpack.c.b16 %v222, %v221
    %v225 = vpack.c.b16 %v223, %v223
    %vm227 = vcmask 195584
    %v229 = vsel %vm227, %v200, 0
    %v232 = vsel %vm227, %v201, 0
    %v235 = vsel %vm227, %v202, 0
    %v238 = vsel %vm227, %v203, 0
    %v241 = vsel %vm227, %v204, 0
    %v244 = vsel %vm227, %v205, 0
    %v247 = vsel %vm227, %v206, 0
    %v250 = vsel %vm227, %v207, 0
    %vm252 = vcmask 1043456
    %v254 = vsel %vm252, %v225, 0
    %256 = vmatprep.subr.bf16.mxu0 0
    %257 = vmatpush1.bf16.msra.mxu0 0
    %258 = vmatprep.subr.bf16.mxu0 0
    %259 = vmatpush1.bf16.msra.mxu0 0
    %260 = vmatprep.subr.bf16.mxu0 0
    %261 = vmatpush1.bf16.msra.mxu0 0
    %262 = vmatprep.subr.bf16.mxu0 0
    %263 = vmatpush1.bf16.msra.mxu0 0
    %264 = vmatprep.subr.bf16.mxu0 0
    %265 = vmatpush1.bf16.msra.mxu0 0
    %266 = vmatprep.subr.bf16.mxu0 0
    %267 = vmatpush1.bf16.msra.mxu0 0
    %268 = vmatprep.subr.bf16.mxu0 0
    %269 = vmatpush1.bf16.msra.mxu0 %v254
    %270 = vmatprep.subr.bf16.mxu0 0
    %271 = vmatpush1.bf16.msra.mxu0 %v224
    %272 = vmatprep.subr.bf16.mxu0 0
    %273 = vmatpush2.bf16.msra.mxu0 0
    %274 = vmatprep.subr.bf16.mxu0 0
    %275 = vmatpush2.bf16.msra.mxu0 0
    %276 = vmatprep.subr.bf16.mxu0 0
    %277 = vmatpush2.bf16.msra.mxu0 0
    %278 = vmatprep.subr.bf16.mxu0 0
    %279 = vmatpush2.bf16.msra.mxu0 0
    %280 = vmatprep.subr.bf16.mxu0 0
    %281 = vmatpush2.bf16.msra.mxu0 0
    %282 = vmatprep.subr.bf16.mxu0 0
    %283 = vmatpush2.bf16.msra.mxu0 0
    %284 = vmatprep.subr.bf16.mxu0 0
    %285 = vmatpush2.bf16.msra.mxu0 0
    %286 = vmatprep.subr.bf16.mxu0 0
    %287 = vmatpush2.bf16.msra.mxu0 0
    %288 = vmatprep.mubr.bf16.mxu0 0
    %289 = vmatmul.mubr.bf16.gmra.mxu0 %v229
    %v290 = vpop.f32.mrf.mxu0
    %v291 = vadd.f32 %v216, %v290
    %v292 = vpop.f32.mrf.mxu0
    %v293 = vpop.f32.mrf.mxu0
    %v294 = vadd.f32 %v216, %v293
    %v295 = vpop.f32.mrf.mxu0
    %296 = vmatprep.mubr.bf16.mxu0 0
    %297 = vmatmul.mubr.bf16.gmra.mxu0 %v232
    %v298 = vpop.f32.mrf.mxu0
    %v299 = vadd.f32 %v216, %v298
    %v300 = vpop.f32.mrf.mxu0
    %v301 = vpop.f32.mrf.mxu0
    %v302 = vadd.f32 %v216, %v301
    %v303 = vpop.f32.mrf.mxu0
    %304 = vmatprep.mubr.bf16.mxu0 0
    %305 = vmatmul.mubr.bf16.gmra.mxu0 %v235
    %v306 = vpop.f32.mrf.mxu0
    %v307 = vadd.f32 %v216, %v306
    %v308 = vpop.f32.mrf.mxu0
    %v309 = vpop.f32.mrf.mxu0
    %v310 = vadd.f32 %v216, %v309
    %v311 = vpop.f32.mrf.mxu0
    %312 = vmatprep.mubr.bf16.mxu0 0
    %313 = vmatmul.mubr.bf16.gmra.mxu0 %v238
    %v314 = vpop.f32.mrf.mxu0
    %v315 = vadd.f32 %v216, %v314
    %v316 = vpop.f32.mrf.mxu0
    %v317 = vpop.f32.mrf.mxu0
    %v318 = vadd.f32 %v216, %v317
    %v319 = vpop.f32.mrf.mxu0
    %320 = vmatprep.mubr.bf16.mxu0 0
    %321 = vmatmul.mubr.bf16.gmra.mxu0 %v241
    %v322 = vpop.f32.mrf.mxu0
    %v323 = vadd.f32 %v216, %v322
    %v324 = vpop.f32.mrf.mxu0
    %v325 = vpop.f32.mrf.mxu0
    %v326 = vadd.f32 %v216, %v325
    %v327 = vpop.f32.mrf.mxu0
    %328 = vmatprep.mubr.bf16.mxu0 0
    %329 = vmatmul.mubr.bf16.gmra.mxu0 %v244
    %v330 = vpop.f32.mrf.mxu0
    %v331 = vadd.f32 %v216, %v330
    %v332 = vpop.f32.mrf.mxu0
    %v333 = vpop.f32.mrf.mxu0
    %v334 = vadd.f32 %v216, %v333
    %v335 = vpop.f32.mrf.mxu0
    %336 = vmatprep.mubr.bf16.mxu0 0
    %337 = vmatmul.mubr.bf16.gmra.mxu0 %v247
    %v338 = vpop.f32.mrf.mxu0
    %v339 = vadd.f32 %v216, %v338
    %v340 = vpop.f32.mrf.mxu0
    %v341 = vpop.f32.mrf.mxu0
    %v342 = vadd.f32 %v216, %v341
    %v343 = vpop.f32.mrf.mxu0
    %344 = vmatprep.mubr.bf16.mxu0 0
    %345 = vmatmul.mubr.bf16.gmra.mxu0 %v250
    %v346 = vpop.f32.mrf.mxu0
    %v347 = vadd.f32 %v216, %v346
    %v348 = vpop.f32.mrf.mxu0
    %v349 = vpop.f32.mrf.mxu0
    %v350 = vadd.f32 %v216, %v349
    %v351 = vpop.f32.mrf.mxu0
    %352 = vdwg.mxu0
    %v353 = vmax.f32 %v291, 0.0
    %v354 = vmax.f32 %v294, 0.0
    %v355 = vmax.f32 %v299, 0.0
    %v356 = vmax.f32 %v302, 0.0
    %v357 = vmax.f32 %v307, 0.0
    %v358 = vmax.f32 %v310, 0.0
    %v359 = vmax.f32 %v315, 0.0
    %v360 = vmax.f32 %v318, 0.0
    %v361 = vmax.f32 %v323, 0.0
    %v362 = vmax.f32 %v326, 0.0
    %v363 = vmax.f32 %v331, 0.0
    %v364 = vmax.f32 %v334, 0.0
    %v365 = vmax.f32 %v339, 0.0
    %v366 = vmax.f32 %v342, 0.0
    %v367 = vmax.f32 %v347, 0.0
    %v368 = vmax.f32 %v350, 0.0
    %v369 = vpack.c.bf16 %v354, %v353
    %v370 = vpack.c.bf16 %v356, %v355
    %v371 = vpack.c.bf16 %v358, %v357
    %v372 = vpack.c.bf16 %v360, %v359
    %v373 = vpack.c.bf16 %v362, %v361
    %v374 = vpack.c.bf16 %v364, %v363
    %v375 = vpack.c.bf16 %v366, %v365
    %v376 = vpack.c.bf16 %v368, %v367
    %v377 = vld [vmem:[#allocation9] sm:$0xf]
    %v378 = vld [vmem:[#allocation9 + $0x4] sm:$0xf]
    %v379 = vld [vmem:[#allocation9 + $0x8] sm:$0xf]
    %v380 = vld [vmem:[#allocation9 + $0xc] sm:$0xf]
    %v381 = vld [vmem:[%s5] sm:$0x1]
    %v383 = vlaneseq
    %v384 = vshrl.u32 %v383, 7
    %v385 = vsub.s32 0, %v384
    %v386 = vrot.slane %v381, %v385
    %v392 = vunpack.c.l.b16 %v377
    %v393 = vunpack.c.l.b16 %v378
    %v394 = vunpack.c.l.b16 %v379
    %v395 = vunpack.c.l.b16 %v380
    %v396 = vpack.c.b16 %v393, %v392
    %v397 = vpack.c.b16 %v395, %v394
    %vm400 = vcmask 261120
    %v402 = vsel %vm400, %v369, 0
    %v405 = vsel %vm400, %v370, 0
    %v408 = vsel %vm400, %v371, 0
    %v411 = vsel %vm400, %v372, 0
    %v414 = vsel %vm400, %v373, 0
    %v417 = vsel %vm400, %v374, 0
    %v420 = vsel %vm400, %v375, 0
    %v423 = vsel %vm400, %v376, 0
    %425 = vmatprep.subr.bf16.mxu0 0
    %426 = vmatpush1.bf16.msra.mxu0 0
    %427 = vmatprep.subr.bf16.mxu0 0
    %428 = vmatpush1.bf16.msra.mxu0 0
    %429 = vmatprep.subr.bf16.mxu0 0
    %430 = vmatpush1.bf16.msra.mxu0 0
    %431 = vmatprep.subr.bf16.mxu0 0
    %432 = vmatpush1.bf16.msra.mxu0 0
    %433 = vmatprep.subr.bf16.mxu0 0
    %434 = vmatpush1.bf16.msra.mxu0 0
    %435 = vmatprep.subr.bf16.mxu0 0
    %436 = vmatpush1.bf16.msra.mxu0 0
    %437 = vmatprep.subr.bf16.mxu0 0
    %438 = vmatpush1.bf16.msra.mxu0 %v397
    %439 = vmatprep.subr.bf16.mxu0 0
    %440 = vmatpush1.bf16.msra.mxu0 %v396
    %441 = vmatprep.subr.bf16.mxu0 0
    %442 = vmatpush2.bf16.msra.mxu0 0
    %443 = vmatprep.subr.bf16.mxu0 0
    %444 = vmatpush2.bf16.msra.mxu0 0
    %445 = vmatprep.subr.bf16.mxu0 0
    %446 = vmatpush2.bf16.msra.mxu0 0
    %447 = vmatprep.subr.bf16.mxu0 0
    %448 = vmatpush2.bf16.msra.mxu0 0
    %449 = vmatprep.subr.bf16.mxu0 0
    %450 = vmatpush2.bf16.msra.mxu0 0
    %451 = vmatprep.subr.bf16.mxu0 0
    %452 = vmatpush2.bf16.msra.mxu0 0
    %453 = vmatprep.subr.bf16.mxu0 0
    %454 = vmatpush2.bf16.msra.mxu0 0
    %455 = vmatprep.subr.bf16.mxu0 0
    %456 = vmatpush2.bf16.msra.mxu0 0
    %457 = vmatprep.mubr.bf16.mxu0 0
    %458 = vmatmul.mubr.bf16.gmra.mxu0 %v402
    %v459 = vpop.f32.mrf.mxu0
    %v460 = vadd.f32 %v386, %v459
    %v461 = vpop.f32.mrf.mxu0
    %v462 = vpop.f32.mrf.mxu0
    %v463 = vadd.f32 %v386, %v462
    %v464 = vpop.f32.mrf.mxu0
    %465 = vmatprep.mubr.bf16.mxu0 0
    %466 = vmatmul.mubr.bf16.gmra.mxu0 %v405
    %v467 = vpop.f32.mrf.mxu0
    %v468 = vadd.f32 %v386, %v467
    %v469 = vpop.f32.mrf.mxu0
    %v470 = vpop.f32.mrf.mxu0
    %v471 = vadd.f32 %v386, %v470
    %v472 = vpop.f32.mrf.mxu0
    %473 = vmatprep.mubr.bf16.mxu0 0
    %474 = vmatmul.mubr.bf16.gmra.mxu0 %v408
    %v475 = vpop.f32.mrf.mxu0
    %v476 = vadd.f32 %v386, %v475
    %v477 = vpop.f32.mrf.mxu0
    %v478 = vpop.f32.mrf.mxu0
    %v479 = vadd.f32 %v386, %v478
    %v480 = vpop.f32.mrf.mxu0
    %481 = vmatprep.mubr.bf16.mxu0 0
    %482 = vmatmul.mubr.bf16.gmra.mxu0 %v411
    %v483 = vpop.f32.mrf.mxu0
    %v484 = vadd.f32 %v386, %v483
    %v485 = vpop.f32.mrf.mxu0
    %v486 = vpop.f32.mrf.mxu0
    %v487 = vadd.f32 %v386, %v486
    %v488 = vpop.f32.mrf.mxu0
    %489 = vmatprep.mubr.bf16.mxu0 0
    %490 = vmatmul.mubr.bf16.gmra.mxu0 %v414
    %v491 = vpop.f32.mrf.mxu0
    %v492 = vadd.f32 %v386, %v491
    %v493 = vpop.f32.mrf.mxu0
    %v494 = vpop.f32.mrf.mxu0
    %v495 = vadd.f32 %v386, %v494
    %v496 = vpop.f32.mrf.mxu0
    %497 = vmatprep.mubr.bf16.mxu0 0
    %498 = vmatmul.mubr.bf16.gmra.mxu0 %v417
    %v499 = vpop.f32.mrf.mxu0
    %v500 = vadd.f32 %v386, %v499
    %v501 = vpop.f32.mrf.mxu0
    %v502 = vpop.f32.mrf.mxu0
    %v503 = vadd.f32 %v386, %v502
    %v504 = vpop.f32.mrf.mxu0
    %505 = vmatprep.mubr.bf16.mxu0 0
    %506 = vmatmul.mubr.bf16.gmra.mxu0 %v420
    %v507 = vpop.f32.mrf.mxu0
    %v508 = vadd.f32 %v386, %v507
    %v509 = vpop.f32.mrf.mxu0
    %v510 = vpop.f32.mrf.mxu0
    %v511 = vadd.f32 %v386, %v510
    %v512 = vpop.f32.mrf.mxu0
    %513 = vmatprep.mubr.bf16.mxu0 0
    %514 = vmatmul.mubr.bf16.gmra.mxu0 %v423
    %v515 = vpop.f32.mrf.mxu0
    %v516 = vadd.f32 %v386, %v515
    %v517 = vpop.f32.mrf.mxu0
    %v518 = vpop.f32.mrf.mxu0
    %v519 = vadd.f32 %v386, %v518
    %v520 = vpop.f32.mrf.mxu0
    %521 = vdwg.mxu0
    %v522 = vmax.f32 %v460, 0.0
    %v523 = vmax.f32 %v463, 0.0
    %v524 = vmax.f32 %v468, 0.0
    %v525 = vmax.f32 %v471, 0.0
    %v526 = vmax.f32 %v476, 0.0
    %v527 = vmax.f32 %v479, 0.0
    %v528 = vmax.f32 %v484, 0.0
    %v529 = vmax.f32 %v487, 0.0
    %v530 = vmax.f32 %v492, 0.0
    %v531 = vmax.f32 %v495, 0.0
    %v532 = vmax.f32 %v500, 0.0
    %v533 = vmax.f32 %v503, 0.0
    %v534 = vmax.f32 %v508, 0.0
    %v535 = vmax.f32 %v511, 0.0
    %v536 = vmax.f32 %v516, 0.0
    %v537 = vmax.f32 %v519, 0.0
    %v538 = vpack.c.bf16 %v523, %v522
    %v539 = vpack.c.bf16 %v525, %v524
    %v540 = vpack.c.bf16 %v527, %v526
    %v541 = vpack.c.bf16 %v529, %v528
    %v542 = vpack.c.bf16 %v531, %v530
    %v543 = vpack.c.bf16 %v533, %v532
    %v544 = vpack.c.bf16 %v535, %v534
    %v545 = vpack.c.bf16 %v537, %v536
    %v546 = vld [vmem:[%s6] sm:$0x1]
    %s547 = sld [smem:[#allocation2]]
    %v548 = vstv %s547
    %v550 = vsel %vm400, %v546, 0
    %v553 = vsel %vm400, %v538, 0
    %v556 = vsel %vm400, %v539, 0
    %v559 = vsel %vm400, %v540, 0
    %v562 = vsel %vm400, %v541, 0
    %v565 = vsel %vm400, %v542, 0
    %v568 = vsel %vm400, %v543, 0
    %v571 = vsel %vm400, %v544, 0
    %v574 = vsel %vm400, %v545, 0
    %576 = vmatprep.subr.bf16.mxu0 0
    %577 = vmatpush1.bf16.xpose.msra.mxu0 %v574
    %578 = vmatprep.subr.bf16.mxu0 0
    %579 = vmatpush1.bf16.xpose.msra.mxu0 %v571
    %580 = vmatprep.subr.bf16.mxu0 0
    %581 = vmatpush1.bf16.xpose.msra.mxu0 %v568
    %582 = vmatprep.subr.bf16.mxu0 0
    %583 = vmatpush1.bf16.xpose.msra.mxu0 %v565
    %584 = vmatprep.subr.bf16.mxu0 0
    %585 = vmatpush1.bf16.xpose.msra.mxu0 %v562
    %586 = vmatprep.subr.bf16.mxu0 0
    %587 = vmatpush1.bf16.xpose.msra.mxu0 %v559
    %588 = vmatprep.subr.bf16.mxu0 0
    %589 = vmatpush1.bf16.xpose.msra.mxu0 %v556
    %590 = vmatprep.subr.bf16.mxu0 0
    %591 = vmatpush1.bf16.xpose.msra.mxu0 %v553
    %592 = vmatprep.subr.bf16.mxu0 0
    %593 = vmatpush2.bf16.xpose.msra.mxu0 0
    %594 = vmatprep.subr.bf16.mxu0 0
    %595 = vmatpush2.bf16.xpose.msra.mxu0 0
    %596 = vmatprep.subr.bf16.mxu0 0
    %597 = vmatpush2.bf16.xpose.msra.mxu0 0
    %598 = vmatprep.subr.bf16.mxu0 0
    %599 = vmatpush2.bf16.xpose.msra.mxu0 0
    %600 = vmatprep.subr.bf16.mxu0 0
    %601 = vmatpush2.bf16.xpose.msra.mxu0 0
    %602 = vmatprep.subr.bf16.mxu0 0
    %603 = vmatpush2.bf16.xpose.msra.mxu0 0
    %604 = vmatprep.subr.bf16.mxu0 0
    %605 = vmatpush2.bf16.xpose.msra.mxu0 0
    %606 = vmatprep.subr.bf16.mxu0 0
    %607 = vmatpush2.bf16.xpose.msra.mxu0 0
    %608 = vmatprep.mubr.bf16.mxu0 0
    %609 = vmatmul.mubr.bf16.gmra.mxu0 %v550
    %v610 = vpop.f32.mrf.mxu0
    %v611 = vadd.f32 %v548, %v610
    %v612 = vpop.f32.mrf.mxu0
    %v613 = vpop.f32.mrf.mxu0
    %v614 = vpop.f32.mrf.mxu0
    %615 = vdwg.mxu0
    %616 = vst [vmem:[#allocation11] sm:$0x1] %v611
    // Predicated region
    $region50: #{tpu_custom_call.1} parent=1 // pred_check
      _
    $region51: #{tpu_custom_call.1} parent=1 // pred_check_branch
      %618 = sbr.rel (0) target = $region53
    $region52: #{tpu_custom_call.1} parent=1 // pred_region
      %s620 = ssub.s32 16, 16
      %621 = vsyncadd [#allocation5], %s620
      %s623 = sshll.u32 [#allocation11], 4
      %s624 = int_to_ptr.vmem [resolvable:$true] %s623
      %626 = dma.vmem_to_hbm [thread:$0]  %s624, 16, %s8, [#allocation5]
    $region53: #{tpu_custom_call.1} parent=1 // pred_fallthru
      _
    // Predicated region
    $region54: #{tpu_custom_call.1} parent=1 // pred_check
      _
    $region55: #{tpu_custom_call.1} parent=1 // pred_check_branch
      %628 = sbr.rel (0) target = $region57
    $region56: #{tpu_custom_call.1} parent=1 // pred_region
      %629 = dma.done [#allocation5], 16
    $region57: #{tpu_custom_call.1} parent=1 // pred_fallthru
      _
    %630 = vsyncpa [#allocation4], 1
    %631 = vsyncpa [#allocation7], 1
    %632 = vsyncpa [#allocation10], 1
    %633 = vsyncpa [#allocation5], 1

</llo_original>
